<compile_context>
chip_gen: v7x
topology: tpu7x:2x2x1
jax: 0.10.0
libtpu: 0.0.40
codegen_flags: <defaults>
</compile_context>

<pallas_src>
import functools

import jax
import jax.numpy as jnp
from jax import lax
from jax.experimental import pallas as pl
from jax.experimental.pallas import tpu as pltpu

_LANE = 128
_SUBLANE = 8
_MIB = 1024 * 1024


def _round_up(x, m):
    return ((x + m - 1) // m) * m


def _vmem_caps():
    """(VMEM bytes per TensorCore, looks-like-a-2-TC-chip) with safe fallbacks."""
    cap = 64 * _MIB          # conservative default, valid on v5e/v6e/v7x
    two_tc = False
    try:
        info = pltpu.get_tpu_info()
        cap_attr = getattr(info, "vmem_capacity_bytes", None)
        if cap_attr:
            cap = int(cap_attr)
            # v7x: 64 MiB VMEM per TC, 2 TCs/chip.  v5e/v6e: 128 MiB, 1 TC.
            two_tc = cap <= 64 * _MIB
    except Exception:
        pass
    return cap, two_tc


def _pick_tbc(bc, h, w, strel, itemsize, budget_bytes):
    """Images (of the B*C independent ones) processed per grid step.

    B*C is the leading (non-layout) block dim, so no lane/sublane alignment is
    needed.  The per-channel VMEM model uses vreg-padded extents (lane dim
    rounds to 128, sublanes to 8) and counts the double-buffered in/out blocks
    plus the live in-kernel temporaries incl. the H-padded slab (h+strel-1 rows).
    """
    wpad = _round_up(w, _LANE)
    hpad = _round_up(h, _SUBLANE)
    hppad = _round_up(h + strel - 1, _SUBLANE)
    per_chan = itemsize * wpad * (9 * hpad + 2 * hppad)
    fit = int(budget_bytes // max(per_chan, 1))
    return max(1, min(bc, fit))


def _dilate_kernel(x_ref, o_ref, *, strel, even, neg_val):
    """x_ref/o_ref: (TBC, H, W) NCHW-native blocks (W = lanes, H = sublanes)."""
    x = x_ref[...]
    tbc, h, w = x.shape
    dtype = x.dtype
    left = strel // 2                 # window reaches `left` to the left/top ...
    right = strel - 1 - left          # ... and `right` to the right/bottom
    neg = jnp.asarray(neg_val, dtype=dtype)

    # ---- W pass: sliding max along the lane axis via XLU rolls. -------------
    # For odd strel the implicit -inf padding is realised with lane-iota masks.
    # For even strel masks are skipped: the wrapped lanes only contaminate the
    # border that is overwritten with exact zeros below (fused ZeroPad2d).
    lane = lax.broadcasted_iota(jnp.int32, (1, 1, w), 2)
    row = x                                            # off == 0 tap (int-safe init)
    for off in range(-left, right + 1):
        if off == 0:
            continue
        # shifted[..., j] = x[..., (j + off) % w]
        shifted = pltpu.roll(x, shift=(-off) % w, axis=2)
        if not even:
            valid = (lane >= -off) & (lane < w - off)  # 0 <= j + off < w
            shifted = jnp.where(valid, shifted, neg)
        row = jnp.maximum(row, shifted)

    # ---- H pass: sliding max along the sublane axis. ------------------------
    # -inf-pad along H once (cheap sublane concat), then a log-doubling window
    # max: acc[:, i, :] == max(rowp[:, i:i+span, :]) at every step.
    parts = []
    if left:
        parts.append(jnp.full((tbc, left, w), neg, dtype=dtype))
    parts.append(row)
    if right:
        parts.append(jnp.full((tbc, right, w), neg, dtype=dtype))
    acc = jnp.concatenate(parts, axis=1) if len(parts) > 1 else row

    span = 1
    while span < strel:
        step = min(span, strel - span)
        n = acc.shape[1]
        acc = jnp.maximum(acc[:, : n - step, :], acc[:, step:, :])
        span += step
    out = acc                                          # (tbc, h, w)

    if even:
        # Fused ZeroPad2d([p, p-1, p, p-1]): the valid pooled window lives at
        # [left:left+ho, left:left+wo]; everything outside is exactly zero.
        ho = h - strel + 1
        wo = w - strel + 1
        ri = lax.broadcasted_iota(jnp.int32, (1, h, 1), 1)
        ci = lax.broadcasted_iota(jnp.int32, (1, 1, w), 2)
        inside = (ri >= left) & (ri < left + ho) & (ci >= left) & (ci < left + wo)
        out = jnp.where(inside, out, jnp.zeros((), dtype=dtype))

    o_ref[...] = out


def dilatation2d(x, strel=3):
    """Pallas TPU implementation of the PyTorch Dilatation2d forward (NCHW in/out)."""
    b, c, h, w = x.shape
    bc = b * c
    dtype = x.dtype
    itemsize = jnp.dtype(dtype).itemsize
    even = (strel % 2 == 0)

    if jnp.issubdtype(dtype, jnp.floating):
        neg_val = float("-inf")                 # PyTorch max_pool2d pad identity
    else:
        neg_val = int(jnp.iinfo(dtype).min)     # int-safe identity for max

    cap, two_tc = _vmem_caps()
    vmem_limit = max(32 * _MIB, min(cap - 8 * _MIB, 112 * _MIB))
    budget = 28 * _MIB if cap <= 64 * _MIB else 72 * _MIB

    tbc = _pick_tbc(bc, h, w, strel, itemsize, budget)
    if two_tc and bc >= 2:
        # v7x only: both TensorCores split the "parallel" axis -> want an even,
        # >=2 number of balanced grid steps.  v5e/v6e keep the biggest tiles.
        steps = max(2, pl.cdiv(bc, tbc))
        steps = steps + (steps % 2)
        tbc = max(1, min(tbc, pl.cdiv(bc, steps)))
    grid = (pl.cdiv(bc, tbc),)

    xr = x.reshape(bc, h, w)                    # free: merges leading dims, no HBM pass

    out = pl.pallas_call(
        functools.partial(_dilate_kernel, strel=strel, even=even, neg_val=neg_val),
        out_shape=jax.ShapeDtypeStruct((bc, h, w), dtype),
        grid=grid,
        in_specs=[pl.BlockSpec((tbc, h, w), lambda i: (i, 0, 0))],
        out_specs=pl.BlockSpec((tbc, h, w), lambda i: (i, 0, 0)),
        compiler_params=pltpu.CompilerParams(
            dimension_semantics=("parallel",),
            vmem_limit_bytes=int(vmem_limit)),
        cost_estimate=pl.CostEstimate(
            flops=2 * bc * h * w * (2 * strel),
            transcendentals=0,
            bytes_accessed=2 * bc * h * w * itemsize),
    )(xr)

    return out.reshape(b, c, h, w)              # free reshape back to NCHW


def _reference(x, strel=3):
    """Pure-JAX reference matching the PyTorch semantics."""
    if strel % 2 == 1:
        p = strel // 2
        return lax.reduce_window(
            x, -jnp.inf, lax.max,
            window_dimensions=(1, 1, strel, strel),
            window_strides=(1, 1, 1, 1),
            padding=((0, 0), (0, 0), (p, p), (p, p)))
    pooled = lax.reduce_window(
        x, -jnp.inf, lax.max,
        window_dimensions=(1, 1, strel, strel),
        window_strides=(1, 1, 1, 1),
        padding="VALID")
    left = strel // 2
    right = strel // 2 - 1
    return jnp.pad(pooled, ((0, 0), (0, 0), (left, right), (left, right)))


if __name__ == "__main__":
    key = jax.random.PRNGKey(0)
    x = jax.random.normal(key, (2, 4, 16, 16), dtype=jnp.float32)

    # Dilatation2d() default (odd strel)
    y3 = dilatation2d(x, strel=3)
    jax.block_until_ready(y3)
    assert y3.shape == (2, 4, 16, 16)
    assert jnp.array_equal(y3, _reference(x, strel=3))

    # wider odd strel (exercises multi-offset lane rolls + H doubling)
    y5 = dilatation2d(x, strel=5)
    jax.block_until_ready(y5)
    assert jnp.array_equal(y5, _reference(x, strel=5))

    # even strel (valid pool + fused asymmetric ZeroPad2d branch)
    y4 = dilatation2d(x, strel=4)
    jax.block_until_ready(y4)
    assert jnp.array_equal(y4, _reference(x, strel=4))

    print("KERNEL_OK")
</pallas_src>

<mosaic_0001>
module attributes {stable_mosaic.version = 11 : i64} {
  func.func @_dilate_kernel(%arg0: i32, %arg1: memref<8x16x16xf32, #tpu.memory_space<vmem>>, %arg2: memref<8x16x16xf32, #tpu.memory_space<vmem>>) attributes {dimension_semantics = [#tpu.dimension_semantics<parallel>], iteration_bounds = array<i64: 1>, scalar_prefetch = 0 : i64, scratch_operands = 0 : i64, tpu.core_type = #tpu.core_type<tc>, window_params = [{transform_indices = @transform_0, window_bounds = array<i64: 8, 16, 16>}, {transform_indices = @transform_1, window_bounds = array<i64: 8, 16, 16>}]} {
    %c0 = arith.constant 0 : index
    %c0_0 = arith.constant 0 : index
    %c0_1 = arith.constant 0 : index
    %0 = vector.load %arg1[%c0, %c0_0, %c0_1] : memref<8x16x16xf32, #tpu.memory_space<vmem>>, vector<8x16x16xf32>
    %1 = tpu.iota {dimensions = array<i32: 2>} : vector<1x1x16xi32>
    %c1_i32 = arith.constant 1 : i32
    %2 = tpu.dynamic_rotate %0 by %c1_i32 dim 2 : vector<8x16x16xf32>, i32 -> vector<8x16x16xf32>
    %c1_i32_2 = arith.constant 1 : i32
    %3 = vector.broadcast %c1_i32_2 : i32 to vector<1x1x16xi32>
    %4 = arith.cmpi sge, %1, %3 : vector<1x1x16xi32>
    %c17_i32 = arith.constant 17 : i32
    %5 = vector.broadcast %c17_i32 : i32 to vector<1x1x16xi32>
    %6 = arith.cmpi slt, %1, %5 : vector<1x1x16xi32>
    %7 = arith.andi %4, %6 : vector<1x1x16xi1>
    %cst = arith.constant 0xFF800000 : f32
    %8 = vector.shape_cast %7 : vector<1x1x16xi1> to vector<1x1x16xi1>
    %9 = vector.broadcast %8 : vector<1x1x16xi1> to vector<8x16x16xi1>
    %10 = vector.broadcast %cst : f32 to vector<8x16x16xf32>
    %11 = arith.select %9, %2, %10 : vector<8x16x16xi1>, vector<8x16x16xf32>
    %12 = arith.maximumf %0, %11 : vector<8x16x16xf32>
    %c15_i32 = arith.constant 15 : i32
    %13 = tpu.dynamic_rotate %0 by %c15_i32 dim 2 : vector<8x16x16xf32>, i32 -> vector<8x16x16xf32>
    %c-1_i32 = arith.constant -1 : i32
    %14 = vector.broadcast %c-1_i32 : i32 to vector<1x1x16xi32>
    %15 = arith.cmpi sge, %1, %14 : vector<1x1x16xi32>
    %c15_i32_3 = arith.constant 15 : i32
    %16 = vector.broadcast %c15_i32_3 : i32 to vector<1x1x16xi32>
    %17 = arith.cmpi slt, %1, %16 : vector<1x1x16xi32>
    %18 = arith.andi %15, %17 : vector<1x1x16xi1>
    %cst_4 = arith.constant 0xFF800000 : f32
    %19 = vector.shape_cast %18 : vector<1x1x16xi1> to vector<1x1x16xi1>
    %20 = vector.broadcast %19 : vector<1x1x16xi1> to vector<8x16x16xi1>
    %21 = vector.broadcast %cst_4 : f32 to vector<8x16x16xf32>
    %22 = arith.select %20, %13, %21 : vector<8x16x16xi1>, vector<8x16x16xf32>
    %23 = arith.maximumf %12, %22 : vector<8x16x16xf32>
    %cst_5 = arith.constant 0xFF800000 : f32
    %24 = vector.broadcast %cst_5 : f32 to vector<8x1x16xf32>
    %cst_6 = arith.constant 0xFF800000 : f32
    %25 = vector.broadcast %cst_6 : f32 to vector<8x1x16xf32>
    %26 = tpu.concatenate %24, %23, %25 in 1 : vector<8x1x16xf32>, vector<8x16x16xf32>, vector<8x1x16xf32> -> vector<8x18x16xf32>
    %27 = vector.extract_strided_slice %26 {offsets = [0, 0, 0], sizes = [8, 17, 16], strides = [1, 1, 1]} : vector<8x18x16xf32> to vector<8x17x16xf32>
    %28 = vector.extract_strided_slice %26 {offsets = [0, 1, 0], sizes = [8, 17, 16], strides = [1, 1, 1]} : vector<8x18x16xf32> to vector<8x17x16xf32>
    %29 = arith.maximumf %27, %28 : vector<8x17x16xf32>
    %30 = vector.extract_strided_slice %29 {offsets = [0, 0, 0], sizes = [8, 16, 16], strides = [1, 1, 1]} : vector<8x17x16xf32> to vector<8x16x16xf32>
    %31 = vector.extract_strided_slice %29 {offsets = [0, 1, 0], sizes = [8, 16, 16], strides = [1, 1, 1]} : vector<8x17x16xf32> to vector<8x16x16xf32>
    %32 = arith.maximumf %30, %31 : vector<8x16x16xf32>
    %c0_7 = arith.constant 0 : index
    %c0_8 = arith.constant 0 : index
    %c0_9 = arith.constant 0 : index
    %33 = vector.load %arg2[%c0_7, %c0_8, %c0_9] : memref<8x16x16xf32, #tpu.memory_space<vmem>>, vector<8x16x16xf32>
    tpu.vector_store %arg2[%c0_7, %c0_8, %c0_9], %32 {strides = array<i32>} : memref<8x16x16xf32, #tpu.memory_space<vmem>>, vector<8x16x16xf32>,
    return
  }
  func.func @transform_0(%arg0: i32) -> (i32, i32, i32) {
    %c0_i32 = arith.constant 0 : i32
    %c0_i32_0 = arith.constant 0 : i32
    %c0_i32_1 = arith.constant 0 : i32
    return %arg0, %c0_i32, %c0_i32_0 : i32, i32, i32
  }
  func.func @transform_1(%arg0: i32) -> (i32, i32, i32) {
    %c0_i32 = arith.constant 0 : i32
    %c0_i32_0 = arith.constant 0 : i32
    %c0_i32_1 = arith.constant 0 : i32
    return %arg0, %c0_i32, %c0_i32_0 : i32, i32, i32
  }
}

</mosaic_0001>

<llo_original>
// kernel: tpu_custom_call.1
$region0: #{tpu_custom_call.1}
  #allocation0 [shape = 'u32[]', space=smem, size = 0x4, offset = 0x4, fixed_abs, tag = 'smem constant byte address 0x4 - core index']
  #allocation1 [shape = 'u32[144,128]{1,0:T(1,128)}', space=vmem, size = 0x12000, scoped, tag = 'internal scratch']
  %s0 = inlined_call_operand.hbm [shape: f32[8,16,16], index: 0, kind: input, shape index: {}]
  %s1 = inlined_call_operand.hbm [shape: f32[8,16,16], index: 1, kind: output, shape index: {}]
  %s2 = sld [smem:[#allocation0]]
  $region18: #{tpu_custom_call.1} parent=0
    _
  %s4 = ssub.s32 1, %s2
  %s5 = scalar_select 0, %s4, %s2
  $region1: #{tpu_custom_call.1} parent=0
    #allocation2 [shape = 'u8[65536]{0}', space=vmem, size = 0x10000, scoped, tag = 'input window, operand 0, single buffered']
    #allocation3 [shape = 's32[1]{0}', space=sflag, size = 0x4, scoped, tag = 'scoped memory for tpu_custom_call.1']
    #allocation4 [shape = 's32[1]{0}', space=sflag, size = 0x4, scoped, tag = 'scoped memory for tpu_custom_call.1']
    #allocation5 [shape = 'u8[65536]{0}', space=vmem, size = 0x10000, scoped, tag = 'output window, operand 0, single buffered']
    %6 = vsyncpa [#allocation3], 0
    %7 = vsyncpa [#allocation4], 0
    // Predicated region
    $region2: #{tpu_custom_call.1} parent=1 // pred_check
      _
    $region3: #{tpu_custom_call.1} parent=1 // pred_check_branch
      %9 = sbr.rel (0) target = $region5
    $region4: #{tpu_custom_call.1} parent=1 // pred_region
      %s11 = ssub.s32 2048, 2048
      %12 = vsyncadd [#allocation3], %s11
      %s13 = sshll.u32 [#allocation2], 4
      %s14 = int_to_ptr.vmem [resolvable:$true] %s13
      %19 = dma.hbm_to_vmem [thread:$0]  %s0, 2048, %s14, [#allocation3], 128, 128, 8
    $region5: #{tpu_custom_call.1} parent=1 // pred_fallthru
      _
    // Predicated region
    $region6: #{tpu_custom_call.1} parent=1 // pred_check
      _
    $region7: #{tpu_custom_call.1} parent=1 // pred_check_branch
      %21 = sbr.rel (0) target = $region9
    $region8: #{tpu_custom_call.1} parent=1 // pred_region
      %22 = dma.done [#allocation3], 2048
    $region9: #{tpu_custom_call.1} parent=1 // pred_fallthru
      _
    %v23 = vld [vmem:[#allocation2] sm:$0xff]
    %v24 = vld [vmem:[#allocation2 + $0x8] sm:$0xff]
    %v25 = vld [vmem:[#allocation2 + $0x10] sm:$0xff]
    %v26 = vld [vmem:[#allocation2 + $0x18] sm:$0xff]
    %v27 = vld [vmem:[#allocation2 + $0x20] sm:$0xff]
    %v28 = vld [vmem:[#allocation2 + $0x28] sm:$0xff]
    %v29 = vld [vmem:[#allocation2 + $0x30] sm:$0xff]
    %v30 = vld [vmem:[#allocation2 + $0x38] sm:$0xff]
    %v31 = vld [vmem:[#allocation2 + $0x40] sm:$0xff]
    %v32 = vld [vmem:[#allocation2 + $0x48] sm:$0xff]
    %v33 = vld [vmem:[#allocation2 + $0x50] sm:$0xff]
    %v34 = vld [vmem:[#allocation2 + $0x58] sm:$0xff]
    %v35 = vld [vmem:[#allocation2 + $0x60] sm:$0xff]
    %v36 = vld [vmem:[#allocation2 + $0x68] sm:$0xff]
    %v37 = vld [vmem:[#allocation2 + $0x70] sm:$0xff]
    %v38 = vld [vmem:[#allocation2 + $0x78] sm:$0xff]
    %v39 = vlaneseq
    %v40 = vand.u32 %v39, 127
    %vm41 = vcmask 1047680
    %42 = vrot.lane.b32.xlu0 %v23, 16
    %v43 = vpop.permute.xlu0 %42
    %v44 = vsel %vm41, %v43, %v23
    %45 = vrot.lane.b32.xlu0 %v24, 16
    %v46 = vpop.permute.xlu0 %45
    %v47 = vsel %vm41, %v46, %v24
    %48 = vrot.lane.b32.xlu0 %v25, 16
    %v49 = vpop.permute.xlu0 %48
    %v50 = vsel %vm41, %v49, %v25
    %51 = vrot.lane.b32.xlu0 %v26, 16
    %v52 = vpop.permute.xlu0 %51
    %v53 = vsel %vm41, %v52, %v26
    %54 = vrot.lane.b32.xlu0 %v27, 16
    %v55 = vpop.permute.xlu0 %54
    %v56 = vsel %vm41, %v55, %v27
    %57 = vrot.lane.b32.xlu0 %v28, 16
    %v58 = vpop.permute.xlu0 %57
    %v59 = vsel %vm41, %v58, %v28
    %60 = vrot.lane.b32.xlu0 %v29, 16
    %v61 = vpop.permute.xlu0 %60
    %v62 = vsel %vm41, %v61, %v29
    %63 = vrot.lane.b32.xlu0 %v30, 16
    %v64 = vpop.permute.xlu0 %63
    %v65 = vsel %vm41, %v64, %v30
    %66 = vrot.lane.b32.xlu0 %v31, 16
    %v67 = vpop.permute.xlu0 %66
    %v68 = vsel %vm41, %v67, %v31
    %69 = vrot.lane.b32.xlu0 %v32, 16
    %v70 = vpop.permute.xlu0 %69
    %v71 = vsel %vm41, %v70, %v32
    %72 = vrot.lane.b32.xlu0 %v33, 16
    %v73 = vpop.permute.xlu0 %72
    %v74 = vsel %vm41, %v73, %v33
    %75 = vrot.lane.b32.xlu0 %v34, 16
    %v76 = vpop.permute.xlu0 %75
    %v77 = vsel %vm41, %v76, %v34
    %78 = vrot.lane.b32.xlu0 %v35, 16
    %v79 = vpop.permute.xlu0 %78
    %v80 = vsel %vm41, %v79, %v35
    %81 = vrot.lane.b32.xlu0 %v36, 16
    %v82 = vpop.permute.xlu0 %81
    %v83 = vsel %vm41, %v82, %v36
    %84 = vrot.lane.b32.xlu0 %v37, 16
    %v85 = vpop.permute.xlu0 %84
    %v86 = vsel %vm41, %v85, %v37
    %87 = vrot.lane.b32.xlu0 %v38, 16
    %v88 = vpop.permute.xlu0 %87
    %v89 = vsel %vm41, %v88, %v38
    %90 = vrot.lane.b32.xlu0 %v44, 16
    %v91 = vpop.permute.xlu0 %90
    %92 = vrot.lane.b32.xlu0 %v47, 16
    %v93 = vpop.permute.xlu0 %92
    %94 = vrot.lane.b32.xlu0 %v50, 16
    %v95 = vpop.permute.xlu0 %94
    %96 = vrot.lane.b32.xlu0 %v53, 16
    %v97 = vpop.permute.xlu0 %96
    %98 = vrot.lane.b32.xlu0 %v56, 16
    %v99 = vpop.permute.xlu0 %98
    %100 = vrot.lane.b32.xlu0 %v59, 16
    %v101 = vpop.permute.xlu0 %100
    %102 = vrot.lane.b32.xlu0 %v62, 16
    %v103 = vpop.permute.xlu0 %102
    %104 = vrot.lane.b32.xlu0 %v65, 16
    %v105 = vpop.permute.xlu0 %104
    %106 = vrot.lane.b32.xlu0 %v68, 16
    %v107 = vpop.permute.xlu0 %106
    %108 = vrot.lane.b32.xlu0 %v71, 16
    %v109 = vpop.permute.xlu0 %108
    %110 = vrot.lane.b32.xlu0 %v74, 16
    %v111 = vpop.permute.xlu0 %110
    %112 = vrot.lane.b32.xlu0 %v77, 16
    %v113 = vpop.permute.xlu0 %112
    %114 = vrot.lane.b32.xlu0 %v80, 16
    %v115 = vpop.permute.xlu0 %114
    %116 = vrot.lane.b32.xlu0 %v83, 16
    %v117 = vpop.permute.xlu0 %116
    %118 = vrot.lane.b32.xlu0 %v86, 16
    %v119 = vpop.permute.xlu0 %118
    %120 = vrot.lane.b32.xlu0 %v89, 16
    %v121 = vpop.permute.xlu0 %120
    %v122 = vsel %vm41, %v91, %v23
    %v123 = vsel %vm41, %v93, %v24
    %v124 = vsel %vm41, %v95, %v25
    %v125 = vsel %vm41, %v97, %v26
    %v126 = vsel %vm41, %v99, %v27
    %v127 = vsel %vm41, %v101, %v28
    %v128 = vsel %vm41, %v103, %v29
    %v129 = vsel %vm41, %v105, %v30
    %v130 = vsel %vm41, %v107, %v31
    %v131 = vsel %vm41, %v109, %v32
    %v132 = vsel %vm41, %v111, %v33
    %v133 = vsel %vm41, %v113, %v34
    %v134 = vsel %vm41, %v115, %v35
    %v135 = vsel %vm41, %v117, %v36
    %v136 = vsel %vm41, %v119, %v37
    %v137 = vsel %vm41, %v121, %v38
    %vm138 = vcmp.ge.s32.totalorder %v40, 1
    %vm139 = vcmp.lt.s32.totalorder %v40, 17
    %vm140 = vmand %vm138, %vm139
    %v141 = vsel %vm140, 1, 0
    %vm142 = vcmp.eq.s32.totalorder %v141, 1
    %159 = vrot.lane.b32.xlu0 %v122, 113
    %v160 = vpop.permute.xlu0 %159
    %161 = vrot.lane.b32.xlu0 %v123, 113
    %v162 = vpop.permute.xlu0 %161
    %163 = vrot.lane.b32.xlu0 %v124, 113
    %v164 = vpop.permute.xlu0 %163
    %165 = vrot.lane.b32.xlu0 %v125, 113
    %v166 = vpop.permute.xlu0 %165
    %167 = vrot.lane.b32.xlu0 %v126, 113
    %v168 = vpop.permute.xlu0 %167
    %169 = vrot.lane.b32.xlu0 %v127, 113
    %v170 = vpop.permute.xlu0 %169
    %171 = vrot.lane.b32.xlu0 %v128, 113
    %v172 = vpop.permute.xlu0 %171
    %173 = vrot.lane.b32.xlu0 %v129, 113
    %v174 = vpop.permute.xlu0 %173
    %175 = vrot.lane.b32.xlu0 %v130, 113
    %v176 = vpop.permute.xlu0 %175
    %177 = vrot.lane.b32.xlu0 %v131, 113
    %v178 = vpop.permute.xlu0 %177
    %179 = vrot.lane.b32.xlu0 %v132, 113
    %v180 = vpop.permute.xlu0 %179
    %181 = vrot.lane.b32.xlu0 %v133, 113
    %v182 = vpop.permute.xlu0 %181
    %183 = vrot.lane.b32.xlu0 %v134, 113
    %v184 = vpop.permute.xlu0 %183
    %185 = vrot.lane.b32.xlu0 %v135, 113
    %v186 = vpop.permute.xlu0 %185
    %187 = vrot.lane.b32.xlu0 %v136, 113
    %v188 = vpop.permute.xlu0 %187
    %189 = vrot.lane.b32.xlu0 %v137, 113
    %v190 = vpop.permute.xlu0 %189
    %v207 = vsel %vm142, %v160, -inf
    %v208 = vsel %vm142, %v162, -inf
    %v209 = vsel %vm142, %v164, -inf
    %v210 = vsel %vm142, %v166, -inf
    %v211 = vsel %vm142, %v168, -inf
    %v212 = vsel %vm142, %v170, -inf
    %v213 = vsel %vm142, %v172, -inf
    %v214 = vsel %vm142, %v174, -inf
    %v215 = vsel %vm142, %v176, -inf
    %v216 = vsel %vm142, %v178, -inf
    %v217 = vsel %vm142, %v180, -inf
    %v218 = vsel %vm142, %v182, -inf
    %v219 = vsel %vm142, %v184, -inf
    %v220 = vsel %vm142, %v186, -inf
    %v221 = vsel %vm142, %v188, -inf
    %v222 = vsel %vm142, %v190, -inf
    %v223 = vmax.f32 %v23, %v207
    %v224 = vmax.f32 %v24, %v208
    %v225 = vmax.f32 %v25, %v209
    %v226 = vmax.f32 %v26, %v210
    %v227 = vmax.f32 %v27, %v211
    %v228 = vmax.f32 %v28, %v212
    %v229 = vmax.f32 %v29, %v213
    %v230 = vmax.f32 %v30, %v214
    %v231 = vmax.f32 %v31, %v215
    %v232 = vmax.f32 %v32, %v216
    %v233 = vmax.f32 %v33, %v217
    %v234 = vmax.f32 %v34, %v218
    %v235 = vmax.f32 %v35, %v219
    %v236 = vmax.f32 %v36, %v220
    %v237 = vmax.f32 %v37, %v221
    %v238 = vmax.f32 %v38, %v222
    %vm239 = vcmp.ge.s32.totalorder %v40, 4294967295
    %vm240 = vcmp.lt.s32.totalorder %v40, 15
    %vm241 = vmand %vm239, %vm240
    %v242 = vsel %vm241, 1, 0
    %vm243 = vcmp.eq.s32.totalorder %v242, 1
    %244 = vrot.lane.b32.xlu0 %v122, 127
    %v245 = vpop.permute.xlu0 %244
    %246 = vrot.lane.b32.xlu0 %v123, 127
    %v247 = vpop.permute.xlu0 %246
    %248 = vrot.lane.b32.xlu0 %v124, 127
    %v249 = vpop.permute.xlu0 %248
    %250 = vrot.lane.b32.xlu0 %v125, 127
    %v251 = vpop.permute.xlu0 %250
    %252 = vrot.lane.b32.xlu0 %v126, 127
    %v253 = vpop.permute.xlu0 %252
    %254 = vrot.lane.b32.xlu0 %v127, 127
    %v255 = vpop.permute.xlu0 %254
    %256 = vrot.lane.b32.xlu0 %v128, 127
    %v257 = vpop.permute.xlu0 %256
    %258 = vrot.lane.b32.xlu0 %v129, 127
    %v259 = vpop.permute.xlu0 %258
    %260 = vrot.lane.b32.xlu0 %v130, 127
    %v261 = vpop.permute.xlu0 %260
    %262 = vrot.lane.b32.xlu0 %v131, 127
    %v263 = vpop.permute.xlu0 %262
    %264 = vrot.lane.b32.xlu0 %v132, 127
    %v265 = vpop.permute.xlu0 %264
    %266 = vrot.lane.b32.xlu0 %v133, 127
    %v267 = vpop.permute.xlu0 %266
    %268 = vrot.lane.b32.xlu0 %v134, 127
    %v269 = vpop.permute.xlu0 %268
    %270 = vrot.lane.b32.xlu0 %v135, 127
    %v271 = vpop.permute.xlu0 %270
    %272 = vrot.lane.b32.xlu0 %v136, 127
    %v273 = vpop.permute.xlu0 %272
    %274 = vrot.lane.b32.xlu0 %v137, 127
    %v275 = vpop.permute.xlu0 %274
    %v292 = vsel %vm243, %v245, -inf
    %v293 = vsel %vm243, %v247, -inf
    %v294 = vsel %vm243, %v249, -inf
    %v295 = vsel %vm243, %v251, -inf
    %v296 = vsel %vm243, %v253, -inf
    %v297 = vsel %vm243, %v255, -inf
    %v298 = vsel %vm243, %v257, -inf
    %v299 = vsel %vm243, %v259, -inf
    %v300 = vsel %vm243, %v261, -inf
    %v301 = vsel %vm243, %v263, -inf
    %v302 = vsel %vm243, %v265, -inf
    %v303 = vsel %vm243, %v267, -inf
    %v304 = vsel %vm243, %v269, -inf
    %v305 = vsel %vm243, %v271, -inf
    %v306 = vsel %vm243, %v273, -inf
    %v307 = vsel %vm243, %v275, -inf
    %v308 = vmax.f32 %v223, %v292
    %v309 = vmax.f32 %v224, %v293
    %v310 = vmax.f32 %v225, %v294
    %v311 = vmax.f32 %v226, %v295
    %v312 = vmax.f32 %v227, %v296
    %v313 = vmax.f32 %v228, %v297
    %v314 = vmax.f32 %v229, %v298
    %v315 = vmax.f32 %v230, %v299
    %v316 = vmax.f32 %v231, %v300
    %v317 = vmax.f32 %v232, %v301
    %v318 = vmax.f32 %v233, %v302
    %v319 = vmax.f32 %v234, %v303
    %v320 = vmax.f32 %v235, %v304
    %v321 = vmax.f32 %v236, %v305
    %v322 = vmax.f32 %v237, %v306
    %v323 = vmax.f32 %v238, %v307
    %vm340 = vcmask 1040384
    %v341 = vrot.slane %v308, 7
    %v342 = vrot.slane %v309, 7
    %v343 = vsel %vm340, %v341, %v342
    %v344 = vrot.slane %v310, 7
    %v345 = vrot.slane %v311, 7
    %v346 = vsel %vm340, %v344, %v345
    %v347 = vrot.slane %v312, 7
    %v348 = vrot.slane %v313, 7
    %v349 = vsel %vm340, %v347, %v348
    %v350 = vrot.slane %v314, 7
    %v351 = vrot.slane %v315, 7
    %v352 = vsel %vm340, %v350, %v351
    %v353 = vrot.slane %v316, 7
    %v354 = vrot.slane %v317, 7
    %v355 = vsel %vm340, %v353, %v354
    %v356 = vrot.slane %v318, 7
    %v357 = vrot.slane %v319, 7
    %v358 = vsel %vm340, %v356, %v357
    %v359 = vrot.slane %v320, 7
    %v360 = vrot.slane %v321, 7
    %v361 = vsel %vm340, %v359, %v360
    %v362 = vrot.slane %v322, 7
    %v363 = vrot.slane %v323, 7
    %v364 = vsel %vm340, %v362, %v363
    %v389 = vsel %vm340, -inf, %v341
    %v390 = vsel %vm340, -inf, %v344
    %v391 = vsel %vm340, -inf, %v347
    %v392 = vsel %vm340, -inf, %v350
    %v393 = vsel %vm340, -inf, %v353
    %v394 = vsel %vm340, -inf, %v356
    %v395 = vsel %vm340, -inf, %v359
    %v396 = vsel %vm340, -inf, %v362
    %v397 = vsel %vm340, %v342, -inf
    %v398 = vsel %vm340, %v345, -inf
    %v399 = vsel %vm340, %v348, -inf
    %v400 = vsel %vm340, %v351, -inf
    %v401 = vsel %vm340, %v354, -inf
    %v402 = vsel %vm340, %v357, -inf
    %v403 = vsel %vm340, %v360, -inf
    %v404 = vsel %vm340, %v363, -inf
    %vm421 = vcmask 1046528
    %v422 = vrot.slane %v389, 1
    %v423 = vrot.slane %v343, 1
    %v424 = vsel %vm421, %v422, %v423
    %v425 = vrot.slane %v397, 1
    %v426 = vsel %vm421, %v423, %v425
    %v427 = vrot.slane %v390, 1
    %v428 = vrot.slane %v346, 1
    %v429 = vsel %vm421, %v427, %v428
    %v430 = vrot.slane %v398, 1
    %v431 = vsel %vm421, %v428, %v430
    %v432 = vrot.slane %v391, 1
    %v433 = vrot.slane %v349, 1
    %v434 = vsel %vm421, %v432, %v433
    %v435 = vrot.slane %v399, 1
    %v436 = vsel %vm421, %v433, %v435
    %v437 = vrot.slane %v392, 1
    %v438 = vrot.slane %v352, 1
    %v439 = vsel %vm421, %v437, %v438
    %v440 = vrot.slane %v400, 1
    %v441 = vsel %vm421, %v438, %v440
    %v442 = vrot.slane %v393, 1
    %v443 = vrot.slane %v355, 1
    %v444 = vsel %vm421, %v442, %v443
    %v445 = vrot.slane %v401, 1
    %v446 = vsel %vm421, %v443, %v445
    %v447 = vrot.slane %v394, 1
    %v448 = vrot.slane %v358, 1
    %v449 = vsel %vm421, %v447, %v448
    %v450 = vrot.slane %v402, 1
    %v451 = vsel %vm421, %v448, %v450
    %v452 = vrot.slane %v395, 1
    %v453 = vrot.slane %v361, 1
    %v454 = vsel %vm421, %v452, %v453
    %v455 = vrot.slane %v403, 1
    %v456 = vsel %vm421, %v453, %v455
    %v457 = vrot.slane %v396, 1
    %v458 = vrot.slane %v364, 1
    %v459 = vsel %vm421, %v457, %v458
    %v460 = vrot.slane %v404, 1
    %v461 = vsel %vm421, %v458, %v460
    %v486 = vmax.f32 %v389, %v424
    %v487 = vmax.f32 %v343, %v426
    %v488 = vmax.f32 %v397, %v425
    %v489 = vmax.f32 %v390, %v429
    %v490 = vmax.f32 %v346, %v431
    %v491 = vmax.f32 %v398, %v430
    %v492 = vmax.f32 %v391, %v434
    %v493 = vmax.f32 %v349, %v436
    %v494 = vmax.f32 %v399, %v435
    %v495 = vmax.f32 %v392, %v439
    %v496 = vmax.f32 %v352, %v441
    %v497 = vmax.f32 %v400, %v440
    %v498 = vmax.f32 %v393, %v444
    %v499 = vmax.f32 %v355, %v446
    %v500 = vmax.f32 %v401, %v445
    %v501 = vmax.f32 %v394, %v449
    %v502 = vmax.f32 %v358, %v451
    %v503 = vmax.f32 %v402, %v450
    %v504 = vmax.f32 %v395, %v454
    %v505 = vmax.f32 %v361, %v456
    %v506 = vmax.f32 %v403, %v455
    %v507 = vmax.f32 %v396, %v459
    %v508 = vmax.f32 %v364, %v461
    %v509 = vmax.f32 %v404, %v460
    %v534 = vrot.slane %v486, 1
    %v535 = vrot.slane %v487, 1
    %v536 = vsel %vm421, %v534, %v535
    %v537 = vrot.slane %v488, 1
    %v538 = vsel %vm421, %v535, %v537
    %v539 = vrot.slane %v489, 1
    %v540 = vrot.slane %v490, 1
    %v541 = vsel %vm421, %v539, %v540
    %v542 = vrot.slane %v491, 1
    %v543 = vsel %vm421, %v540, %v542
    %v544 = vrot.slane %v492, 1
    %v545 = vrot.slane %v493, 1
    %v546 = vsel %vm421, %v544, %v545
    %v547 = vrot.slane %v494, 1
    %v548 = vsel %vm421, %v545, %v547
    %v549 = vrot.slane %v495, 1
    %v550 = vrot.slane %v496, 1
    %v551 = vsel %vm421, %v549, %v550
    %v552 = vrot.slane %v497, 1
    %v553 = vsel %vm421, %v550, %v552
    %v554 = vrot.slane %v498, 1
    %v555 = vrot.slane %v499, 1
    %v556 = vsel %vm421, %v554, %v555
    %v557 = vrot.slane %v500, 1
    %v558 = vsel %vm421, %v555, %v557
    %v559 = vrot.slane %v501, 1
    %v560 = vrot.slane %v502, 1
    %v561 = vsel %vm421, %v559, %v560
    %v562 = vrot.slane %v503, 1
    %v563 = vsel %vm421, %v560, %v562
    %v564 = vrot.slane %v504, 1
    %v565 = vrot.slane %v505, 1
    %v566 = vsel %vm421, %v564, %v565
    %v567 = vrot.slane %v506, 1
    %v568 = vsel %vm421, %v565, %v567
    %v569 = vrot.slane %v507, 1
    %v570 = vrot.slane %v508, 1
    %v571 = vsel %vm421, %v569, %v570
    %v572 = vrot.slane %v509, 1
    %v573 = vsel %vm421, %v570, %v572
    %v590 = vmax.f32 %v486, %v536
    %v591 = vmax.f32 %v487, %v538
    %v592 = vmax.f32 %v489, %v541
    %v593 = vmax.f32 %v490, %v543
    %v594 = vmax.f32 %v492, %v546
    %v595 = vmax.f32 %v493, %v548
    %v596 = vmax.f32 %v495, %v551
    %v597 = vmax.f32 %v496, %v553
    %v598 = vmax.f32 %v498, %v556
    %v599 = vmax.f32 %v499, %v558
    %v600 = vmax.f32 %v501, %v561
    %v601 = vmax.f32 %v502, %v563
    %v602 = vmax.f32 %v504, %v566
    %v603 = vmax.f32 %v505, %v568
    %v604 = vmax.f32 %v507, %v571
    %v605 = vmax.f32 %v508, %v573
    %vm606 = vcmask 130048
    %607 = vst.msk [vmem:[#allocation5] sm:$0xff] %vm606, %v590
    %608 = vst.msk [vmem:[#allocation5 + $0x8] sm:$0xff] %vm606, %v591
    %609 = vst.msk [vmem:[#allocation5 + $0x10] sm:$0xff] %vm606, %v592
    %610 = vst.msk [vmem:[#allocation5 + $0x18] sm:$0xff] %vm606, %v593
    %611 = vst.msk [vmem:[#allocation5 + $0x20] sm:$0xff] %vm606, %v594
    %612 = vst.msk [vmem:[#allocation5 + $0x28] sm:$0xff] %vm606, %v595
    %613 = vst.msk [vmem:[#allocation5 + $0x30] sm:$0xff] %vm606, %v596
    %614 = vst.msk [vmem:[#allocation5 + $0x38] sm:$0xff] %vm606, %v597
    %615 = vst.msk [vmem:[#allocation5 + $0x40] sm:$0xff] %vm606, %v598
    %616 = vst.msk [vmem:[#allocation5 + $0x48] sm:$0xff] %vm606, %v599
    %617 = vst.msk [vmem:[#allocation5 + $0x50] sm:$0xff] %vm606, %v600
    %618 = vst.msk [vmem:[#allocation5 + $0x58] sm:$0xff] %vm606, %v601
    %619 = vst.msk [vmem:[#allocation5 + $0x60] sm:$0xff] %vm606, %v602
    %620 = vst.msk [vmem:[#allocation5 + $0x68] sm:$0xff] %vm606, %v603
    %621 = vst.msk [vmem:[#allocation5 + $0x70] sm:$0xff] %vm606, %v604
    %622 = vst.msk [vmem:[#allocation5 + $0x78] sm:$0xff] %vm606, %v605
    // Predicated region
    $region10: #{tpu_custom_call.1} parent=1 // pred_check
      _
    $region11: #{tpu_custom_call.1} parent=1 // pred_check_branch
      %624 = sbr.rel (0) target = $region13
    $region12: #{tpu_custom_call.1} parent=1 // pred_region
      %s626 = ssub.s32 2048, 2048
      %627 = vsyncadd [#allocation4], %s626
      %s628 = sshll.u32 [#allocation5], 4
      %s629 = int_to_ptr.vmem [resolvable:$true] %s628
      %634 = dma.vmem_to_hbm [thread:$0]  %s629, 2048, %s1, [#allocation4], 128, 128, 8
    $region13: #{tpu_custom_call.1} parent=1 // pred_fallthru
      _
    // Predicated region
    $region14: #{tpu_custom_call.1} parent=1 // pred_check
      _
    $region15: #{tpu_custom_call.1} parent=1 // pred_check_branch
      %636 = sbr.rel (0) target = $region17
    $region16: #{tpu_custom_call.1} parent=1 // pred_region
      %637 = dma.done [#allocation4], 2048
    $region17: #{tpu_custom_call.1} parent=1 // pred_fallthru
      _
    %638 = vsyncpa [#allocation3], 1
    %639 = vsyncpa [#allocation4], 1

</llo_original>
